<compile_context>
chip_gen: v7x
topology: tpu7x:2x2x1
jax: 0.10.0
libtpu: 0.0.40
codegen_flags: <defaults>
</compile_context>

<pallas_src>
import functools

import jax
import jax.numpy as jnp
from jax.experimental import pallas as pl
from jax.experimental.pallas import tpu as pltpu


def fitnet_kernel(x_ref, w1_ref, b1_ref, w2_ref, b2_ref, out_ref):
    # hidden = relu(x @ W1 + b1), accumulated in f32 on the MXU.
    h = jnp.dot(x_ref[...], w1_ref[...], preferred_element_type=jnp.float32)
    h = jnp.maximum(h + b1_ref[...], 0.0)            # (TB, H) + (1, H)
    # out = hidden @ W2 + b2 (cast hidden to the weight compute dtype).
    o = jnp.dot(h.astype(w2_ref.dtype), w2_ref[...],
                preferred_element_type=jnp.float32)
    out_ref[...] = (o + b2_ref[...]).astype(out_ref.dtype)


def _round_up(n: int, m: int) -> int:
    return ((n + m - 1) // m) * m


def _vmem_cap_bytes() -> int:
    """Per-generation VMEM cap (leave headroom for Mosaic internal scratch)."""
    try:
        cap = int(pltpu.get_tpu_info().vmem_capacity_bytes)
    except Exception:
        cap = 64 << 20          # conservative (v7x per-TC) fallback
    return (cap * 3) // 4


def prepare_fitnet_params(w1, b1, w2, b2, compute_dtype=jnp.float32):
    """One-time weight prep: torch-style (out, in) -> (in, out), 2-D f32 biases.

    Call once; reuse the result across forwards (weights are static)."""
    cdt = jnp.dtype(compute_dtype)
    w1t = jnp.asarray(w1.T, dtype=cdt)               # (F, H)
    w2t = jnp.asarray(w2.T, dtype=cdt)               # (H, O)
    b1r = jnp.asarray(b1, dtype=jnp.float32).reshape(1, -1)   # (1, H)
    b2r = jnp.asarray(b2, dtype=jnp.float32).reshape(1, -1)   # (1, O)
    return w1t, b1r, w2t, b2r


@functools.partial(jax.jit, static_argnames=("block_b",))
def fitnet_forward(x, w1t, b1r, w2t, b2r, *, block_b=512):
    """FitNet forward pass.

    x   : (B, F) activations
    w1t : (F, H) pre-transposed hidden-layer weight (from prepare_fitnet_params)
    b1r : (1, H) f32 bias
    w2t : (H, O) pre-transposed output-layer weight
    b2r : (1, O) f32 bias
    Returns (B, O) in x.dtype.
    """
    B, F = x.shape
    H = w1t.shape[1]
    O = w2t.shape[1]
    cdt = w1t.dtype

    SUB, LANE = 8, 128

    # Batch tile: multiple of 8 sublanes, capped at block_b. Keep >= 2 grid
    # steps when possible so v7x's second TensorCore gets work.
    B8 = _round_up(B, SUB)
    TB = min(_round_up(block_b, SUB), B8)
    if B8 // TB < 2 and B8 >= 2 * SUB:
        TB = _round_up((B8 + 1) // 2, SUB)
    B_pad = _round_up(B, TB)
    grid_b = B_pad // TB

    # Only the batch dim is padded (zero rows contribute nothing and are
    # sliced off at the end). F/H/O stay at natural width.
    xc = x.astype(cdt)
    xp = xc if B_pad == B else jnp.zeros((B_pad, F), cdt).at[:B].set(xc)

    out_itemsize = jnp.dtype(x.dtype).itemsize
    cdt_size = jnp.dtype(cdt).itemsize

    flops = 2 * B_pad * (F * H + H * O)
    bytes_accessed = (B_pad * F * cdt_size
                      + (F * H + H * O) * cdt_size
                      + (H + O) * 4
                      + B_pad * O * out_itemsize)

    # VMEM budget: Mosaic pads last dims to 128 / sublanes to 8 in VMEM, so
    # size the estimate on hardware tiles; resident weights + double-buffered
    # x/out tiles + f32 hidden, 2x margin, clamped per-generation.
    F_t, H_t, O_t = (_round_up(d, LANE) for d in (F, H, O))
    vmem_need = (2 * TB * F_t * cdt_size
                 + 2 * TB * O_t * out_itemsize
                 + (F_t * H_t + H_t * O_t) * cdt_size
                 + (H_t + O_t) * 4
                 + TB * H_t * 4)
    vmem_limit = int(min(max(2 * vmem_need, 4 << 20), _vmem_cap_bytes()))

    out_padded = pl.pallas_call(
        fitnet_kernel,
        out_shape=jax.ShapeDtypeStruct((B_pad, O), x.dtype),
        grid=(grid_b,),
        in_specs=[
            pl.BlockSpec((TB, F), lambda i: (i, 0)),   # x tile (pipelined)
            pl.BlockSpec((F, H), lambda i: (0, 0)),    # W1 (VMEM resident)
            pl.BlockSpec((1, H), lambda i: (0, 0)),    # b1
            pl.BlockSpec((H, O), lambda i: (0, 0)),    # W2 (VMEM resident)
            pl.BlockSpec((1, O), lambda i: (0, 0)),    # b2
        ],
        out_specs=pl.BlockSpec((TB, O), lambda i: (i, 0)),
        compiler_params=pltpu.CompilerParams(
            dimension_semantics=("parallel",),         # 2 TCs on v7x
            vmem_limit_bytes=vmem_limit,
        ),
        cost_estimate=pl.CostEstimate(
            flops=flops, transcendentals=0, bytes_accessed=bytes_accessed),
    )(xp, w1t, b1r, w2t, b2r)

    return out_padded if B_pad == B else out_padded[:B]


def reference_forward(x, w1, b1, w2, b2):
    h = jnp.maximum(x @ w1.T + b1, 0.0)
    return h @ w2.T + b2


if __name__ == "__main__":
    # Shapes consistent with FitNet(featureWidth, hiddenWidth, outputWidth).
    # Batch of 256 still exercises a real 2-step grid (TB halved so grid_b>=2).
    batch, feature_width, hidden_width, output_width = 256, 4, 32, 1

    key = jax.random.PRNGKey(0)
    kx, kw1, kb1, kw2, kb2 = jax.random.split(key, 5)

    x = jax.random.normal(kx, (batch, feature_width), dtype=jnp.float32)

    # torch.nn.Linear-style init: U(-1/sqrt(fan_in), 1/sqrt(fan_in)).
    bound1 = 1.0 / jnp.sqrt(feature_width)
    w1 = jax.random.uniform(kw1, (hidden_width, feature_width),
                            minval=-bound1, maxval=bound1, dtype=jnp.float32)
    b1 = jax.random.uniform(kb1, (hidden_width,),
                            minval=-bound1, maxval=bound1, dtype=jnp.float32)

    bound2 = 1.0 / jnp.sqrt(hidden_width)
    w2 = jax.random.uniform(kw2, (output_width, hidden_width),
                            minval=-bound2, maxval=bound2, dtype=jnp.float32)
    b2 = jax.random.uniform(kb2, (output_width,),
                            minval=-bound2, maxval=bound2, dtype=jnp.float32)

    # One-time weight prep (static across forwards). f32 compute keeps the
    # tight tolerance; pass compute_dtype=jnp.bfloat16 for v6e/v7x MXU
    # throughput (relax tolerance to ~1e-2 in that case).
    params = prepare_fitnet_params(w1, b1, w2, b2, compute_dtype=jnp.float32)

    out = fitnet_forward(x, *params, block_b=512)
    out = jax.block_until_ready(out)

    ref = reference_forward(x, w1, b1, w2, b2)
    assert out.shape == (batch, output_width)
    assert jnp.allclose(out, ref, atol=1e-5, rtol=1e-5), "mismatch vs JAX reference"

    print("KERNEL_OK")
</pallas_src>

<mosaic_0001>
module attributes {stable_mosaic.version = 11 : i64} {
  func.func @fitnet_kernel(%arg0: i32, %arg1: memref<128x4xf32, #tpu.memory_space<vmem>>, %arg2: memref<4x32xf32, #tpu.memory_space<vmem>>, %arg3: memref<1x32xf32, #tpu.memory_space<vmem>>, %arg4: memref<32x1xf32, #tpu.memory_space<vmem>>, %arg5: memref<1x1xf32, #tpu.memory_space<vmem>>, %arg6: memref<128x1xf32, #tpu.memory_space<vmem>>) attributes {dimension_semantics = [#tpu.dimension_semantics<parallel>], iteration_bounds = array<i64: 2>, scalar_prefetch = 0 : i64, scratch_operands = 0 : i64, tpu.core_type = #tpu.core_type<tc>, window_params = [{transform_indices = @transform_0, window_bounds = array<i64: 128, 4>}, {pipeline_mode = #tpu.pipeline_mode<synchronous>, transform_indices = @transform_1, window_bounds = array<i64: 4, 32>}, {pipeline_mode = #tpu.pipeline_mode<synchronous>, transform_indices = @transform_2, window_bounds = array<i64: 1, 32>}, {pipeline_mode = #tpu.pipeline_mode<synchronous>, transform_indices = @transform_3, window_bounds = array<i64: 32, 1>}, {pipeline_mode = #tpu.pipeline_mode<synchronous>, transform_indices = @transform_4, window_bounds = array<i64: 1, 1>}, {transform_indices = @transform_5, window_bounds = array<i64: 128, 1>}]} {
    %c0 = arith.constant 0 : index
    %c0_0 = arith.constant 0 : index
    %0 = vector.load %arg1[%c0, %c0_0] : memref<128x4xf32, #tpu.memory_space<vmem>>, vector<128x4xf32>
    %c0_1 = arith.constant 0 : index
    %c0_2 = arith.constant 0 : index
    %1 = vector.load %arg2[%c0_1, %c0_2] : memref<4x32xf32, #tpu.memory_space<vmem>>, vector<4x32xf32>
    %cst = arith.constant dense<0.000000e+00> : vector<128x32xf32>
    %2 = tpu.matmul %0, %1, %cst {dimension_numbers = #tpu.dot_dimension_numbers<[1], [0], [0], [1], [0, 0, 1, 1], [], []>} : vector<128x4xf32>, vector<4x32xf32>, vector<128x32xf32> -> vector<128x32xf32>
    %c0_3 = arith.constant 0 : index
    %c0_4 = arith.constant 0 : index
    %3 = vector.load %arg3[%c0_3, %c0_4] : memref<1x32xf32, #tpu.memory_space<vmem>>, vector<1x32xf32>
    %4 = vector.broadcast %3 : vector<1x32xf32> to vector<128x32xf32>
    %5 = arith.addf %2, %4 : vector<128x32xf32>
    %cst_5 = arith.constant 0.000000e+00 : f32
    %6 = vector.broadcast %cst_5 : f32 to vector<128x32xf32>
    %7 = arith.maximumf %5, %6 : vector<128x32xf32>
    %c0_6 = arith.constant 0 : index
    %c0_7 = arith.constant 0 : index
    %8 = vector.load %arg4[%c0_6, %c0_7] : memref<32x1xf32, #tpu.memory_space<vmem>>, vector<32x1xf32>
    %cst_8 = arith.constant dense<0.000000e+00> : vector<128x1xf32>
    %9 = tpu.matmul %7, %8, %cst_8 {dimension_numbers = #tpu.dot_dimension_numbers<[1], [0], [0], [1], [0, 0, 1, 1], [], []>} : vector<128x32xf32>, vector<32x1xf32>, vector<128x1xf32> -> vector<128x1xf32>
    %c0_9 = arith.constant 0 : index
    %c0_10 = arith.constant 0 : index
    %10 = vector.load %arg5[%c0_9, %c0_10] : memref<1x1xf32, #tpu.memory_space<vmem>>, vector<1x1xf32>
    %11 = vector.broadcast %10 : vector<1x1xf32> to vector<128x1xf32>
    %12 = arith.addf %9, %11 : vector<128x1xf32>
    %c0_11 = arith.constant 0 : index
    %c0_12 = arith.constant 0 : index
    %13 = vector.load %arg6[%c0_11, %c0_12] : memref<128x1xf32, #tpu.memory_space<vmem>>, vector<128x1xf32>
    tpu.vector_store %arg6[%c0_11, %c0_12], %12 {strides = array<i32>} : memref<128x1xf32, #tpu.memory_space<vmem>>, vector<128x1xf32>,
    return
  }
  func.func @transform_0(%arg0: i32) -> (i32, i32) {
    %c0_i32 = arith.constant 0 : i32
    %c0_i32_0 = arith.constant 0 : i32
    return %arg0, %c0_i32 : i32, i32
  }
  func.func @transform_1(%arg0: i32) -> (i32, i32) {
    %c0_i32 = arith.constant 0 : i32
    %c0_i32_0 = arith.constant 0 : i32
    %c0_i32_1 = arith.constant 0 : i32
    return %c0_i32, %c0_i32_0 : i32, i32
  }
  func.func @transform_2(%arg0: i32) -> (i32, i32) {
    %c0_i32 = arith.constant 0 : i32
    %c0_i32_0 = arith.constant 0 : i32
    %c0_i32_1 = arith.constant 0 : i32
    return %c0_i32, %c0_i32_0 : i32, i32
  }
  func.func @transform_3(%arg0: i32) -> (i32, i32) {
    %c0_i32 = arith.constant 0 : i32
    %c0_i32_0 = arith.constant 0 : i32
    %c0_i32_1 = arith.constant 0 : i32
    return %c0_i32, %c0_i32_0 : i32, i32
  }
  func.func @transform_4(%arg0: i32) -> (i32, i32) {
    %c0_i32 = arith.constant 0 : i32
    %c0_i32_0 = arith.constant 0 : i32
    %c0_i32_1 = arith.constant 0 : i32
    return %c0_i32, %c0_i32_0 : i32, i32
  }
  func.func @transform_5(%arg0: i32) -> (i32, i32) {
    %c0_i32 = arith.constant 0 : i32
    %c0_i32_0 = arith.constant 0 : i32
    return %arg0, %c0_i32 : i32, i32
  }
}

</mosaic_0001>

<llo_original>
// kernel: fitnet_forward.1
$region0: #{fitnet_forward.1}
  #allocation0 [shape = 'u32[]', space=smem, size = 0x4, offset = 0x4, fixed_abs, tag = 'smem constant byte address 0x4 - core index']
  #allocation1 [shape = 'u32[144,128]{1,0:T(1,128)}', space=vmem, size = 0x12000, scoped, tag = 'internal scratch']
  #allocation2 [shape = 'f32[1,1]{1,0:T(1,128)S(1)}', space=vmem, size = 0x200, scoped, tag = 'scoped memory for fitnet_forward.1']
  %s0 = inlined_call_operand.vmem [shape: f32[256,4], index: 0, kind: input, shape index: {}]
  %s1 = inlined_call_operand.vmem [shape: f32[4,32], index: 1, kind: input, shape index: {}]
  %s2 = inlined_call_operand.vmem [shape: f32[1,32], index: 2, kind: input, shape index: {}]
  %s3 = inlined_call_operand.vmem [shape: f32[32,1], index: 3, kind: input, shape index: {}]
  %s4 = inlined_call_operand.<no memory space> [shape: f32[1,1], index: 4, kind: input, shape index: {}]
  %s5 = inlined_call_operand.vmem [shape: f32[256,1], index: 5, kind: output, shape index: {}]
  %s6 = sld [smem:[#allocation0]]
  $region53: #{fitnet_forward.1} parent=0
    _
  %s8 = ssub.s32 1, %s6
  %s9 = scalar_select 0, %s8, %s6
  %v10 = vstv %s4
  %11 = vst [vmem:[#allocation2] sm:$0x1] %v10
  loop: start=0, step=1, limit=4
  $region2: #{fitnet_forward.1} parent=0 // loop_pre_header
    _
  $region3: #{fitnet_forward.1} parent=0 // loop_header
    %s13 = sphi 0, %s17
    %p14 = scmp.ge.s32.totalorder %s13, 4
    %s23 = sphi 0, %s25
    %s26 = sphi 0, %s23
    %s27 = sphi 0, %s26
    %s43 = sphi 0, %s27
    %s47 = sphi 0, %s47
    %s49 = sphi 0, %s47
    %s50 = sphi 0, %s49
    %s64 = sphi 0, %s50
    %s68 = sphi 0, %s68
    %s70 = sphi 0, %s68
    %s71 = sphi 0, %s70
    %s85 = sphi 0, %s71
    %s89 = sphi 0, %s89
    %s91 = sphi 0, %s89
    %s92 = sphi 0, %s91
    %s106 = sphi 0, %s92
    %s110 = sphi 0, %s110
    %s112 = sphi 0, %s110
    %s113 = sphi 0, %s112
    %s127 = sphi 0, %s113
    %s133 = sphi 0, %s135
    %s136 = sphi 0, %s133
    %s137 = sphi 0, %s136
    %s153 = sphi 0, %s137
  $region4: #{fitnet_forward.1} parent=0 // loop_header_branch
    %16 = sbr.rel (%p14) target = $region8
  $region5: #{fitnet_forward.1} parent=0 // loop_body
    %s18 = ssub.s32 %s13, 1
    %s19 = ssub.s32 %s13, 2
    %s20 = sadd.s32 %s13, 1
    %s21 = ssub.s32 %s13, %s20
    %p22 = scmp.eq.s32.totalorder %s21, 0
    %s24 = sadd.s32 %s23, 1
    %s25 = scalar_select %p22, %s23, %s24
    %p28 = pneg %p22
    %p29 = scmp.eq.s32.totalorder %s13, 1
    %p30 = por %p28, %p29
    %p31 = scmp.ne.s32.totalorder %s23, %s26
    %p32 = scmp.eq.s32.totalorder %s13, 0
    %p33 = por %p31, %p32
    %p34 = scmp.ne.s32.totalorder %s23, %s26
    %p35 = scmp.eq.s32.totalorder %s18, 1
    %p36 = por %p34, %p35
    %p37 = scmp.ne.s32.totalorder %s26, %s27
    %p38 = scmp.eq.s32.totalorder %s18, 0
    %p39 = por %p37, %p38
    %p40 = scmp.ne.s32.totalorder %s26, %s27
    %p41 = scmp.eq.s32.totalorder %s19, 1
    %p42 = por %p40, %p41
    %p44 = scmp.ne.s32.totalorder %s27, %s43
    %p45 = scmp.eq.s32.totalorder %s19, 0
    %p46 = por %p44, %p45
    %s48 = sadd.s32 %s47, 1
    %p51 = scmp.eq.s32.totalorder %s13, 1
    %p52 = scmp.ne.s32.totalorder %s47, %s49
    %p53 = scmp.eq.s32.totalorder %s13, 0
    %p54 = por %p52, %p53
    %p55 = scmp.ne.s32.totalorder %s47, %s49
    %p56 = scmp.eq.s32.totalorder %s18, 1
    %p57 = por %p55, %p56
    %p58 = scmp.ne.s32.totalorder %s49, %s50
    %p59 = scmp.eq.s32.totalorder %s18, 0
    %p60 = por %p58, %p59
    %p61 = scmp.ne.s32.totalorder %s49, %s50
    %p62 = scmp.eq.s32.totalorder %s19, 1
    %p63 = por %p61, %p62
    %p65 = scmp.ne.s32.totalorder %s50, %s64
    %p66 = scmp.eq.s32.totalorder %s19, 0
    %p67 = por %p65, %p66
    %s69 = sadd.s32 %s68, 1
    %p72 = scmp.eq.s32.totalorder %s13, 1
    %p73 = scmp.ne.s32.totalorder %s68, %s70
    %p74 = scmp.eq.s32.totalorder %s13, 0
    %p75 = por %p73, %p74
    %p76 = scmp.ne.s32.totalorder %s68, %s70
    %p77 = scmp.eq.s32.totalorder %s18, 1
    %p78 = por %p76, %p77
    %p79 = scmp.ne.s32.totalorder %s70, %s71
    %p80 = scmp.eq.s32.totalorder %s18, 0
    %p81 = por %p79, %p80
    %p82 = scmp.ne.s32.totalorder %s70, %s71
    %p83 = scmp.eq.s32.totalorder %s19, 1
    %p84 = por %p82, %p83
    %p86 = scmp.ne.s32.totalorder %s71, %s85
    %p87 = scmp.eq.s32.totalorder %s19, 0
    %p88 = por %p86, %p87
    %s90 = sadd.s32 %s89, 1
    %p93 = scmp.eq.s32.totalorder %s13, 1
    %p94 = scmp.ne.s32.totalorder %s89, %s91
    %p95 = scmp.eq.s32.totalorder %s13, 0
    %p96 = por %p94, %p95
    %p97 = scmp.ne.s32.totalorder %s89, %s91
    %p98 = scmp.eq.s32.totalorder %s18, 1
    %p99 = por %p97, %p98
    %p100 = scmp.ne.s32.totalorder %s91, %s92
    %p101 = scmp.eq.s32.totalorder %s18, 0
    %p102 = por %p100, %p101
    %p103 = scmp.ne.s32.totalorder %s91, %s92
    %p104 = scmp.eq.s32.totalorder %s19, 1
    %p105 = por %p103, %p104
    %p107 = scmp.ne.s32.totalorder %s92, %s106
    %p108 = scmp.eq.s32.totalorder %s19, 0
    %p109 = por %p107, %p108
    %s111 = sadd.s32 %s110, 1
    %p114 = scmp.eq.s32.totalorder %s13, 1
    %p115 = scmp.ne.s32.totalorder %s110, %s112
    %p116 = scmp.eq.s32.totalorder %s13, 0
    %p117 = por %p115, %p116
    %p118 = scmp.ne.s32.totalorder %s110, %s112
    %p119 = scmp.eq.s32.totalorder %s18, 1
    %p120 = por %p118, %p119
    %p121 = scmp.ne.s32.totalorder %s112, %s113
    %p122 = scmp.eq.s32.totalorder %s18, 0
    %p123 = por %p121, %p122
    %p124 = scmp.ne.s32.totalorder %s112, %s113
    %p125 = scmp.eq.s32.totalorder %s19, 1
    %p126 = por %p124, %p125
    %p128 = scmp.ne.s32.totalorder %s113, %s127
    %p129 = scmp.eq.s32.totalorder %s19, 0
    %p130 = por %p128, %p129
    %s131 = ssub.s32 %s13, %s20
    %p132 = scmp.eq.s32.totalorder %s131, 0
    %s134 = sadd.s32 %s133, 1
    %s135 = scalar_select %p132, %s133, %s134
    %p138 = pneg %p132
    %p139 = scmp.eq.s32.totalorder %s13, 1
    %p140 = por %p138, %p139
    %p141 = scmp.ne.s32.totalorder %s133, %s136
    %p142 = scmp.eq.s32.totalorder %s13, 0
    %p143 = por %p141, %p142
    %p144 = scmp.ne.s32.totalorder %s133, %s136
    %p145 = scmp.eq.s32.totalorder %s18, 1
    %p146 = por %p144, %p145
    %p147 = scmp.ne.s32.totalorder %s136, %s137
    %p148 = scmp.eq.s32.totalorder %s18, 0
    %p149 = por %p147, %p148
    %p150 = scmp.ne.s32.totalorder %s136, %s137
    %p151 = scmp.eq.s32.totalorder %s19, 1
    %p152 = por %p150, %p151
    %p154 = scmp.ne.s32.totalorder %s137, %s153
    %p155 = scmp.eq.s32.totalorder %s19, 0
    %p156 = por %p154, %p155
    %p157 = scmp.le.s32.totalorder 1, %s13
    %p158 = scmp.lt.s32.totalorder %s13, 3
    %p159 = pnand %p157, %p158
    %p160 = pneg %p159
    // Predicated region
    $region9: #{fitnet_forward.1} parent=5 // pred_check
      _
    $region10: #{fitnet_forward.1} parent=5 // pred_check_branch
      %162 = sbr.rel (%p159) target = $region12
    $region11: #{fitnet_forward.1} parent=5 // pred_region
      %s163 = ssub.s32 %s13, 1
      // Predicated region
      $region13: #{fitnet_forward.1} parent=11 // pred_check
        %p164 = pneg %p60
      $region14: #{fitnet_forward.1} parent=11 // pred_check_branch
        %166 = sbr.rel (%p164) target = $region16
      $region15: #{fitnet_forward.1} parent=11 // pred_region
        _
      $region16: #{fitnet_forward.1} parent=11 // pred_fallthru
        _
      // Predicated region
      $region17: #{fitnet_forward.1} parent=11 // pred_check
        %p167 = pneg %p81
      $region18: #{fitnet_forward.1} parent=11 // pred_check_branch
        %169 = sbr.rel (%p167) target = $region20
      $region19: #{fitnet_forward.1} parent=11 // pred_region
        _
      $region20: #{fitnet_forward.1} parent=11 // pred_fallthru
        _
      // Predicated region
      $region21: #{fitnet_forward.1} parent=11 // pred_check
        %p170 = pneg %p102
      $region22: #{fitnet_forward.1} parent=11 // pred_check_branch
        %172 = sbr.rel (%p170) target = $region24
      $region23: #{fitnet_forward.1} parent=11 // pred_region
        _
      $region24: #{fitnet_forward.1} parent=11 // pred_fallthru
        _
      // Predicated region
      $region25: #{fitnet_forward.1} parent=11 // pred_check
        %p173 = pneg %p123
      $region26: #{fitnet_forward.1} parent=11 // pred_check_branch
        %175 = sbr.rel (%p173) target = $region28
      $region27: #{fitnet_forward.1} parent=11 // pred_region
        _
      $region28: #{fitnet_forward.1} parent=11 // pred_fallthru
        _
    $region12: #{fitnet_forward.1} parent=5 // pred_fallthru
      _
    %p176 = scmp.lt.s32.totalorder %s13, 2
    // Predicated region
    $region29: #{fitnet_forward.1} parent=5 // pred_check
      %p177 = pneg %p176
    $region30: #{fitnet_forward.1} parent=5 // pred_check_branch
      %179 = sbr.rel (%p177) target = $region32
    $region31: #{fitnet_forward.1} parent=5 // pred_region
      // Predicated region
      $region33: #{fitnet_forward.1} parent=31 // pred_check
        %p180 = pneg %p33
      $region34: #{fitnet_forward.1} parent=31 // pred_check_branch
        %182 = sbr.rel (%p180) target = $region36
      $region35: #{fitnet_forward.1} parent=31 // pred_region
        %s183 = smul.u32 16, %s13
        %p184 = scmp.lt.s32.totalorder %s183, 31
        %s185 = scalar_select %p184, %s183, 31
        %s186 = smul.addr %s185, 8
        %s187 = scalar_lea.vmem %s0, %s186
        %s188 = smul.u32 16, %s13
      $region36: #{fitnet_forward.1} parent=31 // pred_fallthru
        _
    $region32: #{fitnet_forward.1} parent=5 // pred_fallthru
      _
    %p189 = scmp.le.s32.totalorder 1, %s13
    %p190 = scmp.lt.s32.totalorder %s13, 3
    %p191 = pnand %p189, %p190
    %p192 = pneg %p191
    // Predicated region
    $region37: #{fitnet_forward.1} parent=5 // pred_check
      _
    $region38: #{fitnet_forward.1} parent=5 // pred_check_branch
      %194 = sbr.rel (%p191) target = $region40
    $region39: #{fitnet_forward.1} parent=5 // pred_region
      %s195 = ssub.s32 %s13, 1
      %s196 = smul.u32 16, %s18
      %p197 = scmp.lt.s32.totalorder %s196, 31
      %s198 = scalar_select %p197, %s196, 31
      %s199 = smul.addr %s198, 8
      %s200 = scalar_lea.vmem %s0, %s199
      %p201 = pneg %p39
      %p202 = pneg %p36
      %p203 = pneg %p60
      %p204 = pneg %p57
      %p205 = pneg %p81
      %p206 = pneg %p78
      %p207 = pneg %p102
      %p208 = pneg %p99
      %p209 = pneg %p123
      %p210 = pneg %p120
      %p211 = pneg %p149
      %p212 = pneg %p146
      %s213 = smul.u32 16, %s18
      %p214 = scmp.lt.s32.totalorder %s213, 31
      %s215 = scalar_select %p214, %s213, 31
      %s216 = smul.addr %s215, 8
      %s217 = scalar_lea.vmem %s5, %s216
      %s218 = smul.u32 16, %s18
      %p219 = scmp.lt.s32.totalorder %s218, 31
      %s220 = scalar_select %p219, %s218, 31
      %s221 = smul.addr %s220, 8
      %s222 = scalar_lea.vmem %s0, %s221
      %s223 = smul.u32 16, %s18
      %s224 = smul.u32 16, %s18
      %p225 = scmp.lt.s32.totalorder %s224, 31
      %s226 = scalar_select %p225, %s224, 31
      %s227 = smul.addr %s226, 8
      %s228 = scalar_lea.vmem %s5, %s227
      %s229 = smul.u32 16, %s18
      %v230 = vld [vmem:[%s222] sm:$0xff]
      %v231 = vld [vmem:[%s222 + $0x8] sm:$0xff]
      %v232 = vld [vmem:[%s222 + $0x10] sm:$0xff]
      %v233 = vld [vmem:[%s222 + $0x18] sm:$0xff]
      %v234 = vld [vmem:[%s222 + $0x20] sm:$0xff]
      %v235 = vld [vmem:[%s222 + $0x28] sm:$0xff]
      %v236 = vld [vmem:[%s222 + $0x30] sm:$0xff]
      %v237 = vld [vmem:[%s222 + $0x38] sm:$0xff]
      %v238 = vld [vmem:[%s222 + $0x40] sm:$0xff]
      %v239 = vld [vmem:[%s222 + $0x48] sm:$0xff]
      %v240 = vld [vmem:[%s222 + $0x50] sm:$0xff]
      %v241 = vld [vmem:[%s222 + $0x58] sm:$0xff]
      %v242 = vld [vmem:[%s222 + $0x60] sm:$0xff]
      %v243 = vld [vmem:[%s222 + $0x68] sm:$0xff]
      %v244 = vld [vmem:[%s222 + $0x70] sm:$0xff]
      %v245 = vld [vmem:[%s222 + $0x78] sm:$0xff]
      %v246 = vld [vmem:[%s1] sm:$0xf]
      %v247 = vld [vmem:[%s2] sm:$0x1]
      %v249 = vlaneseq
      %v250 = vshrl.u32 %v249, 7
      %v251 = vsub.s32 0, %v250
      %v252 = vrot.slane %v247, %v251
      %vm254 = vcmask 31744
      %v256 = vsel %vm254, %v230, 0
      %v259 = vsel %vm254, %v231, 0
      %v262 = vsel %vm254, %v232, 0
      %v265 = vsel %vm254, %v233, 0
      %v268 = vsel %vm254, %v234, 0
      %v271 = vsel %vm254, %v235, 0
      %v274 = vsel %vm254, %v236, 0
      %v277 = vsel %vm254, %v237, 0
      %v280 = vsel %vm254, %v238, 0
      %v283 = vsel %vm254, %v239, 0
      %v286 = vsel %vm254, %v240, 0
      %v289 = vsel %vm254, %v241, 0
      %v292 = vsel %vm254, %v242, 0
      %v295 = vsel %vm254, %v243, 0
      %v298 = vsel %vm254, %v244, 0
      %v301 = vsel %vm254, %v245, 0
      %vm303 = vcmask 1043456
      %v305 = vsel %vm303, %v246, 0
      %307 = vmatprep.subr.mxu0 0.0
      %308 = vmatpush1.msra.mxu0 %v305
      %309 = vmatprep.subr.mxu0 0.0
      %310 = vmatpush1.msra.mxu0 0.0
      %311 = vmatprep.subr.mxu0 0.0
      %312 = vmatpush1.msra.mxu0 0.0
      %313 = vmatprep.subr.mxu0 0.0
      %314 = vmatpush1.msra.mxu0 0.0
      %315 = vmatprep.subr.mxu0 0.0
      %316 = vmatpush1.msra.mxu0 0.0
      %317 = vmatprep.subr.mxu0 0.0
      %318 = vmatpush1.msra.mxu0 0.0
      %319 = vmatprep.subr.mxu0 0.0
      %320 = vmatpush1.msra.mxu0 0.0
      %321 = vmatprep.subr.mxu0 0.0
      %322 = vmatpush1.msra.mxu0 0.0
      %323 = vmatprep.subr.mxu0 0.0
      %324 = vmatpush1.msra.mxu0 0.0
      %325 = vmatprep.subr.mxu0 0.0
      %326 = vmatpush1.msra.mxu0 0.0
      %327 = vmatprep.subr.mxu0 0.0
      %328 = vmatpush1.msra.mxu0 0.0
      %329 = vmatprep.subr.mxu0 0.0
      %330 = vmatpush1.msra.mxu0 0.0
      %331 = vmatprep.subr.mxu0 0.0
      %332 = vmatpush1.msra.mxu0 0.0
      %333 = vmatprep.subr.mxu0 0.0
      %334 = vmatpush1.msra.mxu0 0.0
      %335 = vmatprep.subr.mxu0 0.0
      %336 = vmatpush1.msra.mxu0 0.0
      %337 = vmatprep.subr.mxu0 0.0
      %338 = vmatpush1.msra.mxu0 0.0
      %339 = vmatprep.subr.mxu0 0.0
      %340 = vmatpush1.msra.mxu0 0.0
      %341 = vmatprep.subr.mxu0 0.0
      %342 = vmatpush1.msra.mxu0 0.0
      %343 = vmatprep.subr.mxu0 0.0
      %344 = vmatpush1.msra.mxu0 0.0
      %345 = vmatprep.subr.mxu0 0.0
      %346 = vmatpush1.msra.mxu0 0.0
      %347 = vmatprep.subr.mxu0 0.0
      %348 = vmatpush1.msra.mxu0 0.0
      %349 = vmatprep.subr.mxu0 0.0
      %350 = vmatpush1.msra.mxu0 0.0
      %351 = vmatprep.subr.mxu0 0.0
      %352 = vmatpush1.msra.mxu0 0.0
      %353 = vmatprep.subr.mxu0 0.0
      %354 = vmatpush1.msra.mxu0 0.0
      %355 = vmatprep.subr.mxu0 0.0
      %356 = vmatpush1.msra.mxu0 0.0
      %357 = vmatprep.subr.mxu0 0.0
      %358 = vmatpush1.msra.mxu0 0.0
      %359 = vmatprep.subr.mxu0 0.0
      %360 = vmatpush1.msra.mxu0 0.0
      %361 = vmatprep.subr.mxu0 0.0
      %362 = vmatpush1.msra.mxu0 0.0
      %363 = vmatprep.subr.mxu0 0.0
      %364 = vmatpush1.msra.mxu0 0.0
      %365 = vmatprep.subr.mxu0 0.0
      %366 = vmatpush1.msra.mxu0 0.0
      %367 = vmatprep.subr.mxu0 0.0
      %368 = vmatpush1.msra.mxu0 0.0
      %369 = vmatprep.subr.mxu0 0.0
      %370 = vmatpush1.msra.mxu0 0.0
      %371 = vmatprep.mubr.f32.mxu0 0.0
      %372 = vmatmul.mubr.f32.gmra.mrb[0].mxu0 %v256
      %v373 = vpop.f32.mrb[0].mxu0
      %v374 = vadd.f32 %v252, %v373
      %v375 = vpop.f32.mrb[0].mxu0
      %376 = vmatprep.mubr.f32.mxu0 0.0
      %377 = vmatmul.mubr.f32.gmra.mrb[0].mxu0 %v259
      %v378 = vpop.f32.mrb[0].mxu0
      %v379 = vadd.f32 %v252, %v378
      %v380 = vpop.f32.mrb[0].mxu0
      %381 = vmatprep.mubr.f32.mxu0 0.0
      %382 = vmatmul.mubr.f32.gmra.mrb[0].mxu0 %v262
      %v383 = vpop.f32.mrb[0].mxu0
      %v384 = vadd.f32 %v252, %v383
      %v385 = vpop.f32.mrb[0].mxu0
      %386 = vmatprep.mubr.f32.mxu0 0.0
      %387 = vmatmul.mubr.f32.gmra.mrb[0].mxu0 %v265
      %v388 = vpop.f32.mrb[0].mxu0
      %v389 = vadd.f32 %v252, %v388
      %v390 = vpop.f32.mrb[0].mxu0
      %391 = vmatprep.mubr.f32.mxu0 0.0
      %392 = vmatmul.mubr.f32.gmra.mrb[0].mxu0 %v268
      %v393 = vpop.f32.mrb[0].mxu0
      %v394 = vadd.f32 %v252, %v393
      %v395 = vpop.f32.mrb[0].mxu0
      %396 = vmatprep.mubr.f32.mxu0 0.0
      %397 = vmatmul.mubr.f32.gmra.mrb[0].mxu0 %v271
      %v398 = vpop.f32.mrb[0].mxu0
      %v399 = vadd.f32 %v252, %v398
      %v400 = vpop.f32.mrb[0].mxu0
      %401 = vmatprep.mubr.f32.mxu0 0.0
      %402 = vmatmul.mubr.f32.gmra.mrb[0].mxu0 %v274
      %v403 = vpop.f32.mrb[0].mxu0
      %v404 = vadd.f32 %v252, %v403
      %v405 = vpop.f32.mrb[0].mxu0
      %406 = vmatprep.mubr.f32.mxu0 0.0
      %407 = vmatmul.mubr.f32.gmra.mrb[0].mxu0 %v277
      %v408 = vpop.f32.mrb[0].mxu0
      %v409 = vadd.f32 %v252, %v408
      %v410 = vpop.f32.mrb[0].mxu0
      %411 = vmatprep.mubr.f32.mxu0 0.0
      %412 = vmatmul.mubr.f32.gmra.mrb[0].mxu0 %v280
      %v413 = vpop.f32.mrb[0].mxu0
      %v414 = vadd.f32 %v252, %v413
      %v415 = vpop.f32.mrb[0].mxu0
      %416 = vmatprep.mubr.f32.mxu0 0.0
      %417 = vmatmul.mubr.f32.gmra.mrb[0].mxu0 %v283
      %v418 = vpop.f32.mrb[0].mxu0
      %v419 = vadd.f32 %v252, %v418
      %v420 = vpop.f32.mrb[0].mxu0
      %421 = vmatprep.mubr.f32.mxu0 0.0
      %422 = vmatmul.mubr.f32.gmra.mrb[0].mxu0 %v286
      %v423 = vpop.f32.mrb[0].mxu0
      %v424 = vadd.f32 %v252, %v423
      %v425 = vpop.f32.mrb[0].mxu0
      %426 = vmatprep.mubr.f32.mxu0 0.0
      %427 = vmatmul.mubr.f32.gmra.mrb[0].mxu0 %v289
      %v428 = vpop.f32.mrb[0].mxu0
      %v429 = vadd.f32 %v252, %v428
      %v430 = vpop.f32.mrb[0].mxu0
      %431 = vmatprep.mubr.f32.mxu0 0.0
      %432 = vmatmul.mubr.f32.gmra.mrb[0].mxu0 %v292
      %v433 = vpop.f32.mrb[0].mxu0
      %v434 = vadd.f32 %v252, %v433
      %v435 = vpop.f32.mrb[0].mxu0
      %436 = vmatprep.mubr.f32.mxu0 0.0
      %437 = vmatmul.mubr.f32.gmra.mrb[0].mxu0 %v295
      %v438 = vpop.f32.mrb[0].mxu0
      %v439 = vadd.f32 %v252, %v438
      %v440 = vpop.f32.mrb[0].mxu0
      %441 = vmatprep.mubr.f32.mxu0 0.0
      %442 = vmatmul.mubr.f32.gmra.mrb[0].mxu0 %v298
      %v443 = vpop.f32.mrb[0].mxu0
      %v444 = vadd.f32 %v252, %v443
      %v445 = vpop.f32.mrb[0].mxu0
      %446 = vmatprep.mubr.f32.mxu0 0.0
      %447 = vmatmul.mubr.f32.gmra.mrb[0].mxu0 %v301
      %v448 = vpop.f32.mrb[0].mxu0
      %v449 = vadd.f32 %v252, %v448
      %v450 = vpop.f32.mrb[0].mxu0
      %451 = vdwg.mxu0
      %v452 = vmax.f32 %v374, 0.0
      %v453 = vmax.f32 %v379, 0.0
      %v454 = vmax.f32 %v384, 0.0
      %v455 = vmax.f32 %v389, 0.0
      %v456 = vmax.f32 %v394, 0.0
      %v457 = vmax.f32 %v399, 0.0
      %v458 = vmax.f32 %v404, 0.0
      %v459 = vmax.f32 %v409, 0.0
      %v460 = vmax.f32 %v414, 0.0
      %v461 = vmax.f32 %v419, 0.0
      %v462 = vmax.f32 %v424, 0.0
      %v463 = vmax.f32 %v429, 0.0
      %v464 = vmax.f32 %v434, 0.0
      %v465 = vmax.f32 %v439, 0.0
      %v466 = vmax.f32 %v444, 0.0
      %v467 = vmax.f32 %v449, 0.0
      %v468 = vld [vmem:[%s3] sm:$0xff]
      %v469 = vld [vmem:[%s3 + $0x8] sm:$0xff]
      %v470 = vld [vmem:[%s3 + $0x10] sm:$0xff]
      %v471 = vld [vmem:[%s3 + $0x18] sm:$0xff]
      %v472 = vld [vmem:[#allocation2] sm:$0x1]
      %v474 = vlaneseq
      %v475 = vshrl.u32 %v474, 7
      %v476 = vsub.s32 0, %v475
      %v477 = vrot.slane %v472, %v476
      %vm479 = vcmask 261120
      %v481 = vsel %vm479, %v452, 0
      %v484 = vsel %vm479, %v453, 0
      %v487 = vsel %vm479, %v454, 0
      %v490 = vsel %vm479, %v455, 0
      %v493 = vsel %vm479, %v456, 0
      %v496 = vsel %vm479, %v457, 0
      %v499 = vsel %vm479, %v458, 0
      %v502 = vsel %vm479, %v459, 0
      %v505 = vsel %vm479, %v460, 0
      %v508 = vsel %vm479, %v461, 0
      %v511 = vsel %vm479, %v462, 0
      %v514 = vsel %vm479, %v463, 0
      %v517 = vsel %vm479, %v464, 0
      %v520 = vsel %vm479, %v465, 0
      %v523 = vsel %vm479, %v466, 0
      %v526 = vsel %vm479, %v467, 0
      %528 = vmatprep.subr.mxu0 0.0
      %529 = vmatpush1.msra.mxu0 %v468
      %530 = vmatprep.subr.mxu0 0.0
      %531 = vmatpush1.msra.mxu0 %v469
      %532 = vmatprep.subr.mxu0 0.0
      %533 = vmatpush1.msra.mxu0 %v470
      %534 = vmatprep.subr.mxu0 0.0
      %535 = vmatpush1.msra.mxu0 %v471
      %536 = vmatprep.subr.mxu0 0.0
      %537 = vmatpush1.msra.mxu0 0.0
      %538 = vmatprep.subr.mxu0 0.0
      %539 = vmatpush1.msra.mxu0 0.0
      %540 = vmatprep.subr.mxu0 0.0
      %541 = vmatpush1.msra.mxu0 0.0
      %542 = vmatprep.subr.mxu0 0.0
      %543 = vmatpush1.msra.mxu0 0.0
      %544 = vmatprep.subr.mxu0 0.0
      %545 = vmatpush1.msra.mxu0 0.0
      %546 = vmatprep.subr.mxu0 0.0
      %547 = vmatpush1.msra.mxu0 0.0
      %548 = vmatprep.subr.mxu0 0.0
      %549 = vmatpush1.msra.mxu0 0.0
      %550 = vmatprep.subr.mxu0 0.0
      %551 = vmatpush1.msra.mxu0 0.0
      %552 = vmatprep.subr.mxu0 0.0
      %553 = vmatpush1.msra.mxu0 0.0
      %554 = vmatprep.subr.mxu0 0.0
      %555 = vmatpush1.msra.mxu0 0.0
      %556 = vmatprep.subr.mxu0 0.0
      %557 = vmatpush1.msra.mxu0 0.0
      %558 = vmatprep.subr.mxu0 0.0
      %559 = vmatpush1.msra.mxu0 0.0
      %560 = vmatprep.subr.mxu0 0.0
      %561 = vmatpush1.msra.mxu0 0.0
      %562 = vmatprep.subr.mxu0 0.0
      %563 = vmatpush1.msra.mxu0 0.0
      %564 = vmatprep.subr.mxu0 0.0
      %565 = vmatpush1.msra.mxu0 0.0
      %566 = vmatprep.subr.mxu0 0.0
      %567 = vmatpush1.msra.mxu0 0.0
      %568 = vmatprep.subr.mxu0 0.0
      %569 = vmatpush1.msra.mxu0 0.0
      %570 = vmatprep.subr.mxu0 0.0
      %571 = vmatpush1.msra.mxu0 0.0
      %572 = vmatprep.subr.mxu0 0.0
      %573 = vmatpush1.msra.mxu0 0.0
      %574 = vmatprep.subr.mxu0 0.0
      %575 = vmatpush1.msra.mxu0 0.0
      %576 = vmatprep.subr.mxu0 0.0
      %577 = vmatpush1.msra.mxu0 0.0
      %578 = vmatprep.subr.mxu0 0.0
      %579 = vmatpush1.msra.mxu0 0.0
      %580 = vmatprep.subr.mxu0 0.0
      %581 = vmatpush1.msra.mxu0 0.0
      %582 = vmatprep.subr.mxu0 0.0
      %583 = vmatpush1.msra.mxu0 0.0
      %584 = vmatprep.subr.mxu0 0.0
      %585 = vmatpush1.msra.mxu0 0.0
      %586 = vmatprep.subr.mxu0 0.0
      %587 = vmatpush1.msra.mxu0 0.0
      %588 = vmatprep.subr.mxu0 0.0
      %589 = vmatpush1.msra.mxu0 0.0
      %590 = vmatprep.subr.mxu0 0.0
      %591 = vmatpush1.msra.mxu0 0.0
      %592 = vmatprep.mubr.f32.mxu0 0.0
      %593 = vmatmul.mubr.f32.gmra.mrb[0].mxu0 %v481
      %v594 = vpop.f32.mrb[0].mxu0
      %v595 = vadd.f32 %v477, %v594
      %v596 = vpop.f32.mrb[0].mxu0
      %597 = vmatprep.mubr.f32.mxu0 0.0
      %598 = vmatmul.mubr.f32.gmra.mrb[0].mxu0 %v484
      %v599 = vpop.f32.mrb[0].mxu0
      %v600 = vadd.f32 %v477, %v599
      %v601 = vpop.f32.mrb[0].mxu0
      %602 = vmatprep.mubr.f32.mxu0 0.0
      %603 = vmatmul.mubr.f32.gmra.mrb[0].mxu0 %v487
      %v604 = vpop.f32.mrb[0].mxu0
      %v605 = vadd.f32 %v477, %v604
      %v606 = vpop.f32.mrb[0].mxu0
      %607 = vmatprep.mubr.f32.mxu0 0.0
      %608 = vmatmul.mubr.f32.gmra.mrb[0].mxu0 %v490
      %v609 = vpop.f32.mrb[0].mxu0
      %v610 = vadd.f32 %v477, %v609
      %v611 = vpop.f32.mrb[0].mxu0
      %612 = vmatprep.mubr.f32.mxu0 0.0
      %613 = vmatmul.mubr.f32.gmra.mrb[0].mxu0 %v493
      %v614 = vpop.f32.mrb[0].mxu0
      %v615 = vadd.f32 %v477, %v614
      %v616 = vpop.f32.mrb[0].mxu0
      %617 = vmatprep.mubr.f32.mxu0 0.0
      %618 = vmatmul.mubr.f32.gmra.mrb[0].mxu0 %v496
      %v619 = vpop.f32.mrb[0].mxu0
      %v620 = vadd.f32 %v477, %v619
      %v621 = vpop.f32.mrb[0].mxu0
      %622 = vmatprep.mubr.f32.mxu0 0.0
      %623 = vmatmul.mubr.f32.gmra.mrb[0].mxu0 %v499
      %v624 = vpop.f32.mrb[0].mxu0
      %v625 = vadd.f32 %v477, %v624
      %v626 = vpop.f32.mrb[0].mxu0
      %627 = vmatprep.mubr.f32.mxu0 0.0
      %628 = vmatmul.mubr.f32.gmra.mrb[0].mxu0 %v502
      %v629 = vpop.f32.mrb[0].mxu0
      %v630 = vadd.f32 %v477, %v629
      %v631 = vpop.f32.mrb[0].mxu0
      %632 = vmatprep.mubr.f32.mxu0 0.0
      %633 = vmatmul.mubr.f32.gmra.mrb[0].mxu0 %v505
      %v634 = vpop.f32.mrb[0].mxu0
      %v635 = vadd.f32 %v477, %v634
      %v636 = vpop.f32.mrb[0].mxu0
      %637 = vmatprep.mubr.f32.mxu0 0.0
      %638 = vmatmul.mubr.f32.gmra.mrb[0].mxu0 %v508
      %v639 = vpop.f32.mrb[0].mxu0
      %v640 = vadd.f32 %v477, %v639
      %v641 = vpop.f32.mrb[0].mxu0
      %642 = vmatprep.mubr.f32.mxu0 0.0
      %643 = vmatmul.mubr.f32.gmra.mrb[0].mxu0 %v511
      %v644 = vpop.f32.mrb[0].mxu0
      %v645 = vadd.f32 %v477, %v644
      %v646 = vpop.f32.mrb[0].mxu0
      %647 = vmatprep.mubr.f32.mxu0 0.0
      %648 = vmatmul.mubr.f32.gmra.mrb[0].mxu0 %v514
      %v649 = vpop.f32.mrb[0].mxu0
      %v650 = vadd.f32 %v477, %v649
      %v651 = vpop.f32.mrb[0].mxu0
      %652 = vmatprep.mubr.f32.mxu0 0.0
      %653 = vmatmul.mubr.f32.gmra.mrb[0].mxu0 %v517
      %v654 = vpop.f32.mrb[0].mxu0
      %v655 = vadd.f32 %v477, %v654
      %v656 = vpop.f32.mrb[0].mxu0
      %657 = vmatprep.mubr.f32.mxu0 0.0
      %658 = vmatmul.mubr.f32.gmra.mrb[0].mxu0 %v520
      %v659 = vpop.f32.mrb[0].mxu0
      %v660 = vadd.f32 %v477, %v659
      %v661 = vpop.f32.mrb[0].mxu0
      %662 = vmatprep.mubr.f32.mxu0 0.0
      %663 = vmatmul.mubr.f32.gmra.mrb[0].mxu0 %v523
      %v664 = vpop.f32.mrb[0].mxu0
      %v665 = vadd.f32 %v477, %v664
      %v666 = vpop.f32.mrb[0].mxu0
      %667 = vmatprep.mubr.f32.mxu0 0.0
      %668 = vmatmul.mubr.f32.gmra.mrb[0].mxu0 %v526
      %v669 = vpop.f32.mrb[0].mxu0
      %v670 = vadd.f32 %v477, %v669
      %v671 = vpop.f32.mrb[0].mxu0
      %672 = vdwg.mxu0
      %vm673 = vcmask 7168
      %674 = vst.msk [vmem:[%s228] sm:$0xff] %vm673, %v595
      %675 = vst.msk [vmem:[%s228 + $0x8] sm:$0xff] %vm673, %v600
      %676 = vst.msk [vmem:[%s228 + $0x10] sm:$0xff] %vm673, %v605
      %677 = vst.msk [vmem:[%s228 + $0x18] sm:$0xff] %vm673, %v610
      %678 = vst.msk [vmem:[%s228 + $0x20] sm:$0xff] %vm673, %v615
      %679 = vst.msk [vmem:[%s228 + $0x28] sm:$0xff] %vm673, %v620
      %680 = vst.msk [vmem:[%s228 + $0x30] sm:$0xff] %vm673, %v625
      %681 = vst.msk [vmem:[%s228 + $0x38] sm:$0xff] %vm673, %v630
      %682 = vst.msk [vmem:[%s228 + $0x40] sm:$0xff] %vm673, %v635
      %683 = vst.msk [vmem:[%s228 + $0x48] sm:$0xff] %vm673, %v640
      %684 = vst.msk [vmem:[%s228 + $0x50] sm:$0xff] %vm673, %v645
      %685 = vst.msk [vmem:[%s228 + $0x58] sm:$0xff] %vm673, %v650
      %686 = vst.msk [vmem:[%s228 + $0x60] sm:$0xff] %vm673, %v655
      %687 = vst.msk [vmem:[%s228 + $0x68] sm:$0xff] %vm673, %v660
      %688 = vst.msk [vmem:[%s228 + $0x70] sm:$0xff] %vm673, %v665
      %689 = vst.msk [vmem:[%s228 + $0x78] sm:$0xff] %vm673, %v670
      %s690 = smul.u32 16, %s18
      %p691 = scmp.lt.s32.totalorder %s690, 31
      %s692 = scalar_select %p691, %s690, 31
      %s693 = smul.addr %s692, 8
      %s694 = scalar_lea.vmem %s5, %s693
      // Predicated region
      $region41: #{fitnet_forward.1} parent=39 // pred_check
        %p695 = pneg %p146
      $region42: #{fitnet_forward.1} parent=39 // pred_check_branch
        %697 = sbr.rel (%p695) target = $region44
      $region43: #{fitnet_forward.1} parent=39 // pred_region
        %s698 = smul.u32 16, %s18
      $region44: #{fitnet_forward.1} parent=39 // pred_fallthru
        _
    $region40: #{fitnet_forward.1} parent=5 // pred_fallthru
      _
    %p699 = scmp.le.s32.totalorder 2, %s13
    // Predicated region
    $region45: #{fitnet_forward.1} parent=5 // pred_check
      %p700 = pneg %p699
    $region46: #{fitnet_forward.1} parent=5 // pred_check_branch
      %702 = sbr.rel (%p700) target = $region48
    $region47: #{fitnet_forward.1} parent=5 // pred_region
      %s703 = ssub.s32 %s13, 2
      // Predicated region
      $region49: #{fitnet_forward.1} parent=47 // pred_check
        %p704 = pneg %p152
      $region50: #{fitnet_forward.1} parent=47 // pred_check_branch
        %706 = sbr.rel (%p704) target = $region52
      $region51: #{fitnet_forward.1} parent=47 // pred_region
        %s707 = smul.u32 16, %s19
        %p708 = scmp.lt.s32.totalorder %s707, 31
        %s709 = scalar_select %p708, %s707, 31
        %s710 = smul.addr %s709, 8
        %s711 = scalar_lea.vmem %s5, %s710
      $region52: #{fitnet_forward.1} parent=47 // pred_fallthru
        _
    $region48: #{fitnet_forward.1} parent=5 // pred_fallthru
      _
  $region6: #{fitnet_forward.1} parent=0 // loop_footer
    %s17 = sadd.s32 1, %s13
  $region7: #{fitnet_forward.1} parent=0 // loop_footer_branch
    %12 = sbr.rel target = $region3
  $region8: #{fitnet_forward.1} parent=0 // loop_exit
    _

</llo_original>
